<compile_context>
chip_gen: v7x
topology: tpu7x:2x2x1
jax: 0.10.0
libtpu: 0.0.40
codegen_flags: <defaults>
</compile_context>

<pallas_src>
import jax
import jax.numpy as jnp
from jax.experimental import pallas as pl
from jax.experimental.pallas import tpu as pltpu


# --------------------------------------------------------------------------
# Kernel body
# --------------------------------------------------------------------------
def _gated_mlp_kernel(x_ref, wg_ref, wu_ref, wd_ref, o_ref, acc_ref):
    """One (m_tile, i_tile) grid step of the fused gated MLP.

    x_ref  : (tm, H)   activation tile (full-H contraction)
    wg_ref : (H, ti)   gate weight tile
    wu_ref : (H, ti)   up weight tile
    wd_ref : (ti, H)   down weight tile
    o_ref  : (tm, H)   output tile (resident across the i axis)
    acc_ref: (tm, H)   persistent f32 accumulator scratch
    """
    i = pl.program_id(1)

    @pl.when(i == 0)
    def _():
        acc_ref[...] = jnp.zeros_like(acc_ref)

    x = x_ref[...]                                                  # (tm, H)
    gate = jnp.dot(x, wg_ref[...],
                   preferred_element_type=jnp.float32)              # MXU
    up = jnp.dot(x, wu_ref[...],
                 preferred_element_type=jnp.float32)                # MXU
    # SiLU(gate) * up in f32; reuse `gate` in place so only one f32 (tm, ti)
    # temporary is live between the MXU phases (VPU/EUP filler work).
    gate = gate * jax.nn.sigmoid(gate)
    gate = gate * up
    # Partial down-projection, accumulated in f32 across the I tiles.
    acc_ref[...] += jnp.dot(gate.astype(x.dtype), wd_ref[...],
                            preferred_element_type=jnp.float32)     # MXU

    @pl.when(i == pl.num_programs(1) - 1)
    def _():
        o_ref[...] = acc_ref[...].astype(o_ref.dtype)


# --------------------------------------------------------------------------
# VMEM budgeting / tile selection
# --------------------------------------------------------------------------
def _sublane_multiple(dtype):
    """Packed-sublane row multiple for the dtype (f32: 8, bf16: 16, 8-bit: 32)."""
    isz = jnp.dtype(dtype).itemsize
    if isz >= 4:
        return 8
    if isz == 2:
        return 16
    return 32


def _vmem_budget_bytes():
    """Per-generation VMEM budget (and vmem_limit_bytes) with Mosaic headroom."""
    cap = None
    try:
        info = pltpu.get_tpu_info()
        cap = getattr(info, "vmem_capacity_bytes", None)
    except Exception:
        cap = None
    if cap is None:
        # Unknown part: be conservative (assume the small 64 MiB/TC VMEM).
        return 56 * 1024 * 1024
    if cap <= 64 * 1024 * 1024:
        # v7x-class: 64 MiB per TensorCore; leave headroom for internal scratch.
        return min(cap - 8 * 1024 * 1024, 56 * 1024 * 1024)
    # v5e / v6e: 128 MiB physical; raise the scoped limit well above default.
    return min(cap - 28 * 1024 * 1024, 100 * 1024 * 1024)


def _tile_vmem_bytes(tm, ti, H, itemsize, io_bufs):
    """Explicit VMEM footprint of one grid step's buffers."""
    x_bytes = io_bufs * tm * H * itemsize            # x tile (const across i)
    wgu_bytes = 2 * 2 * H * ti * itemsize            # Wg + Wu, double-buffered
    wd_bytes = 2 * ti * H * itemsize                 # Wd, double-buffered
    out_bytes = io_bufs * tm * H * itemsize          # out tile (written at i==last)
    acc_bytes = tm * H * 4                           # f32 accumulator scratch
    return x_bytes + wgu_bytes + wd_bytes + out_bytes + acc_bytes


def _divisor_tiles(dim, candidates):
    ts = [t for t in candidates if t <= dim and dim % t == 0]
    return ts if ts else [dim]


def _select_tiles(M_pad, H, I, itemsize, budget, io_bufs):
    """Largest (tm, ti) fitting the VMEM budget; shrink ti first, then tm."""
    tm_cands = _divisor_tiles(M_pad, (1024, 512, 256, 128, 64, 32, 16, 8))
    # Megacore: keep >= 2 m-tiles whenever possible so the "parallel" axis
    # actually feeds both TensorCores (v7x), even for small-M decode shapes.
    two_plus = [t for t in tm_cands if M_pad // t >= 2]
    if two_plus:
        tm_cands = two_plus
    # Prefer ti >= 256 so the down-projection contraction keeps the 2x256^2
    # MXU full; only fall back to 128 if nothing >= 256 fits the budget.
    ti_pref = _divisor_tiles(I, (512, 256))
    ti_fallback = _divisor_tiles(I, (128,))

    ti_cands = ti_pref
    for ti_cands in (ti_pref, ti_fallback):
        for tm in tm_cands:                 # largest tm first
            for ti in ti_cands:             # shrink ti before shrinking tm
                if _tile_vmem_bytes(tm, ti, H, itemsize, io_bufs) <= budget:
                    return tm, ti
    # Nothing fits (extreme H): return the smallest tiles and let the compiler
    # decide. TODO(synk): tk (H-contraction) tiling removes this case.
    return tm_cands[-1], ti_cands[-1]


def _io_block_spec(block_shape, index_map, single_buffer):
    """BlockSpec for blocks whose index is constant across the inner axis."""
    if single_buffer:
        try:
            # The second pipeline buffer is dead (index constant across i);
            # single-buffer it to free tm*H*itemsize of VMEM.
            return pl.BlockSpec(block_shape, index_map,
                                pipeline_mode=pl.Buffered(1))
        except Exception:
            pass  # older Pallas without pipeline_mode / Buffered
    return pl.BlockSpec(block_shape, index_map)


# --------------------------------------------------------------------------
# pallas_call wrapper
# --------------------------------------------------------------------------
def _gated_mlp_pallas(x2d, wg_t, wu_t, wd_t, *, single_buffer_io):
    M_pad, H = x2d.shape
    I = wg_t.shape[1]
    itemsize = jnp.dtype(x2d.dtype).itemsize

    budget = _vmem_budget_bytes()
    io_bufs = 1 if single_buffer_io else 2
    tm, ti = _select_tiles(M_pad, H, I, itemsize, budget, io_bufs)
    grid_m = M_pad // tm
    grid = (grid_m, I // ti)

    # Honest traffic estimate: Wg/Wu/Wd tiles are re-DMA'd once per m-tile
    # (their index_map depends on i, which resets every m); x is read once per
    # m-tile (its block index is constant across i).
    cost = pl.CostEstimate(
        flops=6 * M_pad * H * I,                        # three M*H*I matmuls
        transcendentals=M_pad * I,                      # sigmoid
        bytes_accessed=(M_pad * H * itemsize            # x in
                        + 3 * H * I * itemsize * grid_m # weights, re-streamed
                        + M_pad * H * itemsize),        # out
    )

    x_spec = _io_block_spec((tm, H), lambda m, i: (m, 0), single_buffer_io)
    out_spec = _io_block_spec((tm, H), lambda m, i: (m, 0), single_buffer_io)

    return pl.pallas_call(
        _gated_mlp_kernel,
        out_shape=jax.ShapeDtypeStruct((M_pad, H), x2d.dtype),
        grid_spec=pltpu.PrefetchScalarGridSpec(
            num_scalar_prefetch=0,
            grid=grid,
            in_specs=[
                x_spec,                                            # x tile
                pl.BlockSpec((H, ti), lambda m, i: (0, i)),        # Wg tile
                pl.BlockSpec((H, ti), lambda m, i: (0, i)),        # Wu tile
                pl.BlockSpec((ti, H), lambda m, i: (i, 0)),        # Wd tile
            ],
            out_specs=out_spec,
            scratch_shapes=[pltpu.VMEM((tm, H), jnp.float32)],
        ),
        compiler_params=pltpu.CompilerParams(
            # M axis parallel (megacore split), reduction axis arbitrary.
            dimension_semantics=("parallel", "arbitrary"),
            vmem_limit_bytes=budget,
        ),
        cost_estimate=cost,
    )(x2d, wg_t, wu_t, wd_t)


def gated_mlp(x, wg_t, wu_t, wd_t):
    """Fused gated-MLP forward.

    Args:
      x    : (B, S, H) activations.
      wg_t : (H, I)  W_gate, pre-transposed once at init (not per call).
      wu_t : (H, I)  W_up,   pre-transposed once at init.
      wd_t : (I, H)  W_down, pre-transposed once at init.
    Returns:
      (B, S, H) output, same dtype as x.
    """
    B, S, H = x.shape
    M = B * S
    x2d = x.reshape(M, H)

    # Pad rows to the packed-sublane multiple of the dtype so (8,128)-style
    # tiling holds without masked row handling (16 for bf16, 32 for 8-bit).
    mult = _sublane_multiple(x.dtype)
    M_pad = ((M + mult - 1) // mult) * mult
    if M_pad != M:
        x2d = jnp.pad(x2d, ((0, M_pad - M), (0, 0)))

    try:
        out = _gated_mlp_pallas(x2d, wg_t, wu_t, wd_t, single_buffer_io=True)
    except Exception:
        # Fallback: default double-buffered x/out blocks; tiles are re-sized
        # for the larger footprint so the VMEM budget still closes.
        out = _gated_mlp_pallas(x2d, wg_t, wu_t, wd_t, single_buffer_io=False)

    if M_pad != M:
        out = out[:M]
    return out.reshape(B, S, H)


def gated_mlp_ref(x, w_gate, w_up, w_down):
    """Pure-JAX reference mirroring the PyTorch forward (weights in (out,in))."""
    g = jnp.einsum("bsh,ih->bsi", x, w_gate)
    u = jnp.einsum("bsh,ih->bsi", x, w_up)
    h = g * jax.nn.sigmoid(g) * u
    return jnp.einsum("bsi,hi->bsh", h, w_down)


if __name__ == "__main__":
    # Small shapes consistent with the module: (batch, seq, hidden), intermediate.
    B, S, H, I = 2, 8, 32, 64

    key = jax.random.PRNGKey(0)
    kx, kg, ku, kd = jax.random.split(key, 4)

    x = jax.random.normal(kx, (B, S, H), dtype=jnp.float32)
    # nn.Linear weight layout is (out_features, in_features).
    w_gate = jax.random.normal(kg, (I, H), dtype=jnp.float32) * 0.05
    w_up = jax.random.normal(ku, (I, H), dtype=jnp.float32) * 0.05
    w_down = jax.random.normal(kd, (H, I), dtype=jnp.float32) * 0.05

    # Pre-transpose ONCE at init (parameter-pytree layout), not per call.
    wg_t = jnp.asarray(w_gate.T)   # (H, I)
    wu_t = jnp.asarray(w_up.T)     # (H, I)
    wd_t = jnp.asarray(w_down.T)   # (I, H)

    out = gated_mlp(x, wg_t, wu_t, wd_t)
    jax.block_until_ready(out)

    ref = gated_mlp_ref(x, w_gate, w_up, w_down)
    assert out.shape == (B, S, H)
    assert jnp.allclose(out, ref, atol=1e-5, rtol=1e-5)

    print("KERNEL_OK")
</pallas_src>

<mosaic_0001>
module attributes {stable_mosaic.version = 11 : i64} {
  func.func @_gated_mlp_kernel(%arg0: i32, %arg1: i32, %arg2: memref<8x32xf32, #tpu.memory_space<vmem>>, %arg3: memref<32x64xf32, #tpu.memory_space<vmem>>, %arg4: memref<32x64xf32, #tpu.memory_space<vmem>>, %arg5: memref<64x32xf32, #tpu.memory_space<vmem>>, %arg6: memref<8x32xf32, #tpu.memory_space<vmem>>, %arg7: memref<8x32xf32, #tpu.memory_space<vmem>>) attributes {dimension_semantics = [#tpu.dimension_semantics<parallel>, #tpu.dimension_semantics<arbitrary>], iteration_bounds = array<i64: 2, 1>, scalar_prefetch = 0 : i64, scratch_operands = 1 : i64, tpu.core_type = #tpu.core_type<tc>, window_params = [{pipeline_mode = #tpu.pipeline_mode<synchronous>, transform_indices = @transform_0, window_bounds = array<i64: 8, 32>}, {transform_indices = @transform_1, window_bounds = array<i64: 32, 64>}, {transform_indices = @transform_2, window_bounds = array<i64: 32, 64>}, {transform_indices = @transform_3, window_bounds = array<i64: 64, 32>}, {pipeline_mode = #tpu.pipeline_mode<synchronous>, transform_indices = @transform_4, window_bounds = array<i64: 8, 32>}]} {
    %c0_i32 = arith.constant 0 : i32
    %0 = arith.cmpi eq, %arg1, %c0_i32 : i32
    %1 = arith.extui %0 : i1 to i32
    %c0_i32_0 = arith.constant 0 : i32
    %2 = arith.cmpi ne, %1, %c0_i32_0 : i32
    scf.if %2 {
      %cst_17 = arith.constant 0.000000e+00 : f32
      %23 = vector.broadcast %cst_17 : f32 to vector<8x32xf32>
      %c0_18 = arith.constant 0 : index
      %c0_19 = arith.constant 0 : index
      %24 = vector.load %arg7[%c0_18, %c0_19] : memref<8x32xf32, #tpu.memory_space<vmem>>, vector<8x32xf32>
      tpu.vector_store %arg7[%c0_18, %c0_19], %23 {strides = array<i32>} : memref<8x32xf32, #tpu.memory_space<vmem>>, vector<8x32xf32>,
    } else {
    }
    %c0 = arith.constant 0 : index
    %c0_1 = arith.constant 0 : index
    %3 = vector.load %arg2[%c0, %c0_1] : memref<8x32xf32, #tpu.memory_space<vmem>>, vector<8x32xf32>
    %c0_2 = arith.constant 0 : index
    %c0_3 = arith.constant 0 : index
    %4 = vector.load %arg3[%c0_2, %c0_3] : memref<32x64xf32, #tpu.memory_space<vmem>>, vector<32x64xf32>
    %cst = arith.constant dense<0.000000e+00> : vector<8x64xf32>
    %5 = tpu.matmul %3, %4, %cst {dimension_numbers = #tpu.dot_dimension_numbers<[1], [0], [0], [1], [0, 0, 1, 1], [], []>} : vector<8x32xf32>, vector<32x64xf32>, vector<8x64xf32> -> vector<8x64xf32>
    %c0_4 = arith.constant 0 : index
    %c0_5 = arith.constant 0 : index
    %6 = vector.load %arg4[%c0_4, %c0_5] : memref<32x64xf32, #tpu.memory_space<vmem>>, vector<32x64xf32>
    %cst_6 = arith.constant dense<0.000000e+00> : vector<8x64xf32>
    %7 = tpu.matmul %3, %6, %cst_6 {dimension_numbers = #tpu.dot_dimension_numbers<[1], [0], [0], [1], [0, 0, 1, 1], [], []>} : vector<8x32xf32>, vector<32x64xf32>, vector<8x64xf32> -> vector<8x64xf32>
    %8 = arith.negf %5 : vector<8x64xf32>
    %9 = math.exp %8 : vector<8x64xf32>
    %cst_7 = arith.constant 1.000000e+00 : f32
    %10 = vector.broadcast %cst_7 : f32 to vector<8x64xf32>
    %11 = arith.addf %10, %9 : vector<8x64xf32>
    %12 = arith.divf %10, %11 : vector<8x64xf32>
    %13 = arith.mulf %5, %12 : vector<8x64xf32>
    %14 = arith.mulf %13, %7 : vector<8x64xf32>
    %c0_8 = arith.constant 0 : index
    %c0_9 = arith.constant 0 : index
    %15 = vector.load %arg7[%c0_8, %c0_9] : memref<8x32xf32, #tpu.memory_space<vmem>>, vector<8x32xf32>
    %c0_10 = arith.constant 0 : index
    %c0_11 = arith.constant 0 : index
    %16 = vector.load %arg5[%c0_10, %c0_11] : memref<64x32xf32, #tpu.memory_space<vmem>>, vector<64x32xf32>
    %cst_12 = arith.constant dense<0.000000e+00> : vector<8x32xf32>
    %17 = tpu.matmul %14, %16, %cst_12 {dimension_numbers = #tpu.dot_dimension_numbers<[1], [0], [0], [1], [0, 0, 1, 1], [], []>} : vector<8x64xf32>, vector<64x32xf32>, vector<8x32xf32> -> vector<8x32xf32>
    %18 = arith.addf %15, %17 : vector<8x32xf32>
    %c0_13 = arith.constant 0 : index
    %c0_14 = arith.constant 0 : index
    %19 = vector.load %arg7[%c0_13, %c0_14] : memref<8x32xf32, #tpu.memory_space<vmem>>, vector<8x32xf32>
    tpu.vector_store %arg7[%c0_13, %c0_14], %18 {strides = array<i32>} : memref<8x32xf32, #tpu.memory_space<vmem>>, vector<8x32xf32>,
    %c0_i32_15 = arith.constant 0 : i32
    %20 = arith.cmpi eq, %arg1, %c0_i32_15 : i32
    %21 = arith.extui %20 : i1 to i32
    %c0_i32_16 = arith.constant 0 : i32
    %22 = arith.cmpi ne, %21, %c0_i32_16 : i32
    scf.if %22 {
      %c0_17 = arith.constant 0 : index
      %c0_18 = arith.constant 0 : index
      %23 = vector.load %arg7[%c0_17, %c0_18] : memref<8x32xf32, #tpu.memory_space<vmem>>, vector<8x32xf32>
      %c0_19 = arith.constant 0 : index
      %c0_20 = arith.constant 0 : index
      %24 = vector.load %arg6[%c0_19, %c0_20] : memref<8x32xf32, #tpu.memory_space<vmem>>, vector<8x32xf32>
      tpu.vector_store %arg6[%c0_19, %c0_20], %23 {strides = array<i32>} : memref<8x32xf32, #tpu.memory_space<vmem>>, vector<8x32xf32>,
    } else {
    }
    return
  }
  func.func @transform_0(%arg0: i32, %arg1: i32) -> (i32, i32) {
    %c0_i32 = arith.constant 0 : i32
    %c0_i32_0 = arith.constant 0 : i32
    return %arg0, %c0_i32 : i32, i32
  }
  func.func @transform_1(%arg0: i32, %arg1: i32) -> (i32, i32) {
    %c0_i32 = arith.constant 0 : i32
    %c0_i32_0 = arith.constant 0 : i32
    return %c0_i32, %arg1 : i32, i32
  }
  func.func @transform_2(%arg0: i32, %arg1: i32) -> (i32, i32) {
    %c0_i32 = arith.constant 0 : i32
    %c0_i32_0 = arith.constant 0 : i32
    return %c0_i32, %arg1 : i32, i32
  }
  func.func @transform_3(%arg0: i32, %arg1: i32) -> (i32, i32) {
    %c0_i32 = arith.constant 0 : i32
    %c0_i32_0 = arith.constant 0 : i32
    return %arg1, %c0_i32 : i32, i32
  }
  func.func @transform_4(%arg0: i32, %arg1: i32) -> (i32, i32) {
    %c0_i32 = arith.constant 0 : i32
    %c0_i32_0 = arith.constant 0 : i32
    return %arg0, %c0_i32 : i32, i32
  }
}

module attributes {stable_mosaic.version = 11 : i64} {
  func.func @_gated_mlp_kernel(%arg0: i32, %arg1: i32, %arg2: memref<8x32xf32, #tpu.memory_space<vmem>>, %arg3: memref<32x64xf32, #tpu.memory_space<vmem>>, %arg4: memref<32x64xf32, #tpu.memory_space<vmem>>, %arg5: memref<64x32xf32, #tpu.memory_space<vmem>>, %arg6: memref<8x32xf32, #tpu.memory_space<vmem>>, %arg7: memref<8x32xf32, #tpu.memory_space<vmem>>) attributes {dimension_semantics = [#tpu.dimension_semantics<parallel>, #tpu.dimension_semantics<arbitrary>], iteration_bounds = array<i64: 2, 1>, scalar_prefetch = 0 : i64, scratch_operands = 1 : i64, tpu.core_type = #tpu.core_type<tc>, window_params = [{transform_indices = @transform_0, window_bounds = array<i64: 8, 32>}, {transform_indices = @transform_1, window_bounds = array<i64: 32, 64>}, {transform_indices = @transform_2, window_bounds = array<i64: 32, 64>}, {transform_indices = @transform_3, window_bounds = array<i64: 64, 32>}, {transform_indices = @transform_4, window_bounds = array<i64: 8, 32>}]} {
    %c0_i32 = arith.constant 0 : i32
    %0 = arith.cmpi eq, %arg1, %c0_i32 : i32
    %1 = arith.extui %0 : i1 to i32
    %c0_i32_0 = arith.constant 0 : i32
    %2 = arith.cmpi ne, %1, %c0_i32_0 : i32
    scf.if %2 {
      %cst_17 = arith.constant 0.000000e+00 : f32
      %23 = vector.broadcast %cst_17 : f32 to vector<8x32xf32>
      %c0_18 = arith.constant 0 : index
      %c0_19 = arith.constant 0 : index
      %24 = vector.load %arg7[%c0_18, %c0_19] : memref<8x32xf32, #tpu.memory_space<vmem>>, vector<8x32xf32>
      tpu.vector_store %arg7[%c0_18, %c0_19], %23 {strides = array<i32>} : memref<8x32xf32, #tpu.memory_space<vmem>>, vector<8x32xf32>,
    } else {
    }
    %c0 = arith.constant 0 : index
    %c0_1 = arith.constant 0 : index
    %3 = vector.load %arg2[%c0, %c0_1] : memref<8x32xf32, #tpu.memory_space<vmem>>, vector<8x32xf32>
    %c0_2 = arith.constant 0 : index
    %c0_3 = arith.constant 0 : index
    %4 = vector.load %arg3[%c0_2, %c0_3] : memref<32x64xf32, #tpu.memory_space<vmem>>, vector<32x64xf32>
    %cst = arith.constant dense<0.000000e+00> : vector<8x64xf32>
    %5 = tpu.matmul %3, %4, %cst {dimension_numbers = #tpu.dot_dimension_numbers<[1], [0], [0], [1], [0, 0, 1, 1], [], []>} : vector<8x32xf32>, vector<32x64xf32>, vector<8x64xf32> -> vector<8x64xf32>
    %c0_4 = arith.constant 0 : index
    %c0_5 = arith.constant 0 : index
    %6 = vector.load %arg4[%c0_4, %c0_5] : memref<32x64xf32, #tpu.memory_space<vmem>>, vector<32x64xf32>
    %cst_6 = arith.constant dense<0.000000e+00> : vector<8x64xf32>
    %7 = tpu.matmul %3, %6, %cst_6 {dimension_numbers = #tpu.dot_dimension_numbers<[1], [0], [0], [1], [0, 0, 1, 1], [], []>} : vector<8x32xf32>, vector<32x64xf32>, vector<8x64xf32> -> vector<8x64xf32>
    %8 = arith.negf %5 : vector<8x64xf32>
    %9 = math.exp %8 : vector<8x64xf32>
    %cst_7 = arith.constant 1.000000e+00 : f32
    %10 = vector.broadcast %cst_7 : f32 to vector<8x64xf32>
    %11 = arith.addf %10, %9 : vector<8x64xf32>
    %12 = arith.divf %10, %11 : vector<8x64xf32>
    %13 = arith.mulf %5, %12 : vector<8x64xf32>
    %14 = arith.mulf %13, %7 : vector<8x64xf32>
    %c0_8 = arith.constant 0 : index
    %c0_9 = arith.constant 0 : index
    %15 = vector.load %arg7[%c0_8, %c0_9] : memref<8x32xf32, #tpu.memory_space<vmem>>, vector<8x32xf32>
    %c0_10 = arith.constant 0 : index
    %c0_11 = arith.constant 0 : index
    %16 = vector.load %arg5[%c0_10, %c0_11] : memref<64x32xf32, #tpu.memory_space<vmem>>, vector<64x32xf32>
    %cst_12 = arith.constant dense<0.000000e+00> : vector<8x32xf32>
    %17 = tpu.matmul %14, %16, %cst_12 {dimension_numbers = #tpu.dot_dimension_numbers<[1], [0], [0], [1], [0, 0, 1, 1], [], []>} : vector<8x64xf32>, vector<64x32xf32>, vector<8x32xf32> -> vector<8x32xf32>
    %18 = arith.addf %15, %17 : vector<8x32xf32>
    %c0_13 = arith.constant 0 : index
    %c0_14 = arith.constant 0 : index
    %19 = vector.load %arg7[%c0_13, %c0_14] : memref<8x32xf32, #tpu.memory_space<vmem>>, vector<8x32xf32>
    tpu.vector_store %arg7[%c0_13, %c0_14], %18 {strides = array<i32>} : memref<8x32xf32, #tpu.memory_space<vmem>>, vector<8x32xf32>,
    %c0_i32_15 = arith.constant 0 : i32
    %20 = arith.cmpi eq, %arg1, %c0_i32_15 : i32
    %21 = arith.extui %20 : i1 to i32
    %c0_i32_16 = arith.constant 0 : i32
    %22 = arith.cmpi ne, %21, %c0_i32_16 : i32
    scf.if %22 {
      %c0_17 = arith.constant 0 : index
      %c0_18 = arith.constant 0 : index
      %23 = vector.load %arg7[%c0_17, %c0_18] : memref<8x32xf32, #tpu.memory_space<vmem>>, vector<8x32xf32>
      %c0_19 = arith.constant 0 : index
      %c0_20 = arith.constant 0 : index
      %24 = vector.load %arg6[%c0_19, %c0_20] : memref<8x32xf32, #tpu.memory_space<vmem>>, vector<8x32xf32>
      tpu.vector_store %arg6[%c0_19, %c0_20], %23 {strides = array<i32>} : memref<8x32xf32, #tpu.memory_space<vmem>>, vector<8x32xf32>,
    } else {
    }
    return
  }
  func.func @transform_0(%arg0: i32, %arg1: i32) -> (i32, i32) {
    %c0_i32 = arith.constant 0 : i32
    %c0_i32_0 = arith.constant 0 : i32
    return %arg0, %c0_i32 : i32, i32
  }
  func.func @transform_1(%arg0: i32, %arg1: i32) -> (i32, i32) {
    %c0_i32 = arith.constant 0 : i32
    %c0_i32_0 = arith.constant 0 : i32
    return %c0_i32, %arg1 : i32, i32
  }
  func.func @transform_2(%arg0: i32, %arg1: i32) -> (i32, i32) {
    %c0_i32 = arith.constant 0 : i32
    %c0_i32_0 = arith.constant 0 : i32
    return %c0_i32, %arg1 : i32, i32
  }
  func.func @transform_3(%arg0: i32, %arg1: i32) -> (i32, i32) {
    %c0_i32 = arith.constant 0 : i32
    %c0_i32_0 = arith.constant 0 : i32
    return %arg1, %c0_i32 : i32, i32
  }
  func.func @transform_4(%arg0: i32, %arg1: i32) -> (i32, i32) {
    %c0_i32 = arith.constant 0 : i32
    %c0_i32_0 = arith.constant 0 : i32
    return %arg0, %c0_i32 : i32, i32
  }
}

</mosaic_0001>

<llo_original>
// kernel: tpu_custom_call.1
$region0: #{tpu_custom_call.1}
  #allocation0 [shape = 'u32[]', space=smem, size = 0x4, offset = 0x4, fixed_abs, tag = 'smem constant byte address 0x4 - core index']
  #allocation1 [shape = 'u32[144,128]{1,0:T(1,128)}', space=vmem, size = 0x12000, scoped, tag = 'internal scratch']
  #allocation2 [shape = 'f32[8,32]{1,0:T(8,128)}', space=vmem, size = 0x1000, scoped, tag = 'scratch operand']
  %s0 = inlined_call_operand.vmem [shape: f32[16,32], index: 0, kind: input, shape index: {}]
  %s1 = inlined_call_operand.vmem [shape: f32[32,64], index: 1, kind: input, shape index: {}]
  %s2 = inlined_call_operand.vmem [shape: f32[32,64], index: 2, kind: input, shape index: {}]
  %s3 = inlined_call_operand.vmem [shape: f32[64,32], index: 3, kind: input, shape index: {}]
  %s4 = inlined_call_operand.hbm [shape: f32[16,32], index: 4, kind: output, shape index: {}]
  %s5 = sld [smem:[#allocation0]]
  $region57: #{tpu_custom_call.1} parent=0
    _
  %s7 = ssub.s32 1, %s5
  %s8 = scalar_select 0, %s7, %s5
  $region1: #{tpu_custom_call.1} parent=0
    #allocation3 [shape = 'u8[4096]{0}', space=vmem, size = 0x1000, scoped, tag = 'output window, operand 0, single buffered']
    #allocation4 [shape = 's32[2]{0}', space=sflag, size = 0x8, scoped, tag = 'scoped memory for tpu_custom_call.1']
    %9 = vsyncpa [#allocation4], 0
    loop: start=0, step=1, limit=4
    $region2: #{tpu_custom_call.1} parent=1 // loop_pre_header
      _
    $region3: #{tpu_custom_call.1} parent=1 // loop_header
      %s11 = sphi 0, %s15
      %p12 = scmp.ge.s32.totalorder %s11, 4
      %s18 = sphi 0, %s30
      %s19 = sphi 0, %s26
      %s20 = sphi 0, %s18
      %s21 = sphi 0, %s19
      %s22 = sphi 0, %s20
      %s23 = sphi 0, %s21
      %s33 = sphi 0, %s35
      %s36 = sphi 0, %s33
      %s37 = sphi 0, %s36
      %s53 = sphi 0, %s37
      %s59 = sphi 0, %s61
      %s62 = sphi 0, %s59
      %s63 = sphi 0, %s62
      %s79 = sphi 0, %s63
      %s85 = sphi 0, %s87
      %s88 = sphi 0, %s85
      %s89 = sphi 0, %s88
      %s105 = sphi 0, %s89
      %s111 = sphi 0, %s113
      %s114 = sphi 0, %s111
      %s115 = sphi 0, %s114
      %s131 = sphi 0, %s115
      %s137 = sphi 0, %s139
      %s140 = sphi 0, %s137
      %s141 = sphi 0, %s140
      %s157 = sphi 0, %s141
    $region4: #{tpu_custom_call.1} parent=1 // loop_header_branch
      %14 = sbr.rel (%p12) target = $region8
    $region5: #{tpu_custom_call.1} parent=1 // loop_body
      %s16 = ssub.s32 %s11, 1
      %s17 = ssub.s32 %s11, 2
      %s24 = sadd.s32 1, %s19
      %p25 = scmp.ge.s32.totalorder %s24, 1
      %s26 = scalar_select %p25, 0, %s24
      %s27 = sadd.s32 1, %s18
      %s28 = scalar_select %p25, %s27, %s18
      %p29 = scmp.ge.s32.totalorder %s28, 2
      %s30 = scalar_select %p29, 0, %s28
      %s31 = ssub.s32 %s18, %s30
      %p32 = scmp.eq.s32.totalorder %s31, 0
      %s34 = sadd.s32 %s33, 1
      %s35 = scalar_select %p32, %s33, %s34
      %p38 = pneg %p32
      %p39 = scmp.eq.s32.totalorder %s11, 1
      %p40 = por %p38, %p39
      %p41 = scmp.ne.s32.totalorder %s33, %s36
      %p42 = scmp.eq.s32.totalorder %s11, 0
      %p43 = por %p41, %p42
      %p44 = scmp.ne.s32.totalorder %s33, %s36
      %p45 = scmp.eq.s32.totalorder %s16, 1
      %p46 = por %p44, %p45
      %p47 = scmp.ne.s32.totalorder %s36, %s37
      %p48 = scmp.eq.s32.totalorder %s16, 0
      %p49 = por %p47, %p48
      %p50 = scmp.ne.s32.totalorder %s36, %s37
      %p51 = scmp.eq.s32.totalorder %s17, 1
      %p52 = por %p50, %p51
      %p54 = scmp.ne.s32.totalorder %s37, %s53
      %p55 = scmp.eq.s32.totalorder %s17, 0
      %p56 = por %p54, %p55
      %s57 = ssub.s32 %s19, %s26
      %p58 = scmp.eq.s32.totalorder %s57, 0
      %s60 = sadd.s32 %s59, 1
      %s61 = scalar_select %p58, %s59, %s60
      %p64 = pneg %p58
      %p65 = scmp.eq.s32.totalorder %s11, 1
      %p66 = por %p64, %p65
      %p67 = scmp.ne.s32.totalorder %s59, %s62
      %p68 = scmp.eq.s32.totalorder %s11, 0
      %p69 = por %p67, %p68
      %p70 = scmp.ne.s32.totalorder %s59, %s62
      %p71 = scmp.eq.s32.totalorder %s16, 1
      %p72 = por %p70, %p71
      %p73 = scmp.ne.s32.totalorder %s62, %s63
      %p74 = scmp.eq.s32.totalorder %s16, 0
      %p75 = por %p73, %p74
      %p76 = scmp.ne.s32.totalorder %s62, %s63
      %p77 = scmp.eq.s32.totalorder %s17, 1
      %p78 = por %p76, %p77
      %p80 = scmp.ne.s32.totalorder %s63, %s79
      %p81 = scmp.eq.s32.totalorder %s17, 0
      %p82 = por %p80, %p81
      %s83 = ssub.s32 %s19, %s26
      %p84 = scmp.eq.s32.totalorder %s83, 0
      %s86 = sadd.s32 %s85, 1
      %s87 = scalar_select %p84, %s85, %s86
      %p90 = pneg %p84
      %p91 = scmp.eq.s32.totalorder %s11, 1
      %p92 = por %p90, %p91
      %p93 = scmp.ne.s32.totalorder %s85, %s88
      %p94 = scmp.eq.s32.totalorder %s11, 0
      %p95 = por %p93, %p94
      %p96 = scmp.ne.s32.totalorder %s85, %s88
      %p97 = scmp.eq.s32.totalorder %s16, 1
      %p98 = por %p96, %p97
      %p99 = scmp.ne.s32.totalorder %s88, %s89
      %p100 = scmp.eq.s32.totalorder %s16, 0
      %p101 = por %p99, %p100
      %p102 = scmp.ne.s32.totalorder %s88, %s89
      %p103 = scmp.eq.s32.totalorder %s17, 1
      %p104 = por %p102, %p103
      %p106 = scmp.ne.s32.totalorder %s89, %s105
      %p107 = scmp.eq.s32.totalorder %s17, 0
      %p108 = por %p106, %p107
      %s109 = ssub.s32 %s19, %s26
      %p110 = scmp.eq.s32.totalorder %s109, 0
      %s112 = sadd.s32 %s111, 1
      %s113 = scalar_select %p110, %s111, %s112
      %p116 = pneg %p110
      %p117 = scmp.eq.s32.totalorder %s11, 1
      %p118 = por %p116, %p117
      %p119 = scmp.ne.s32.totalorder %s111, %s114
      %p120 = scmp.eq.s32.totalorder %s11, 0
      %p121 = por %p119, %p120
      %p122 = scmp.ne.s32.totalorder %s111, %s114
      %p123 = scmp.eq.s32.totalorder %s16, 1
      %p124 = por %p122, %p123
      %p125 = scmp.ne.s32.totalorder %s114, %s115
      %p126 = scmp.eq.s32.totalorder %s16, 0
      %p127 = por %p125, %p126
      %p128 = scmp.ne.s32.totalorder %s114, %s115
      %p129 = scmp.eq.s32.totalorder %s17, 1
      %p130 = por %p128, %p129
      %p132 = scmp.ne.s32.totalorder %s115, %s131
      %p133 = scmp.eq.s32.totalorder %s17, 0
      %p134 = por %p132, %p133
      %s135 = ssub.s32 %s18, %s30
      %p136 = scmp.eq.s32.totalorder %s135, 0
      %s138 = sadd.s32 %s137, 1
      %s139 = scalar_select %p136, %s137, %s138
      %p142 = pneg %p136
      %p143 = scmp.eq.s32.totalorder %s11, 1
      %p144 = por %p142, %p143
      %p145 = scmp.ne.s32.totalorder %s137, %s140
      %p146 = scmp.eq.s32.totalorder %s11, 0
      %p147 = por %p145, %p146
      %p148 = scmp.ne.s32.totalorder %s137, %s140
      %p149 = scmp.eq.s32.totalorder %s16, 1
      %p150 = por %p148, %p149
      %p151 = scmp.ne.s32.totalorder %s140, %s141
      %p152 = scmp.eq.s32.totalorder %s16, 0
      %p153 = por %p151, %p152
      %p154 = scmp.ne.s32.totalorder %s140, %s141
      %p155 = scmp.eq.s32.totalorder %s17, 1
      %p156 = por %p154, %p155
      %p158 = scmp.ne.s32.totalorder %s141, %s157
      %p159 = scmp.eq.s32.totalorder %s17, 0
      %p160 = por %p158, %p159
      %p161 = scmp.le.s32.totalorder 1, %s11
      %p162 = scmp.lt.s32.totalorder %s11, 3
      %p163 = pnand %p161, %p162
      %p164 = pneg %p163
      // Predicated region
      $region9: #{tpu_custom_call.1} parent=5 // pred_check
        _
      $region10: #{tpu_custom_call.1} parent=5 // pred_check_branch
        %166 = sbr.rel (%p163) target = $region12
      $region11: #{tpu_custom_call.1} parent=5 // pred_region
        %s167 = ssub.s32 %s11, 1
        // Predicated region
        $region13: #{tpu_custom_call.1} parent=11 // pred_check
          %p168 = pneg %p49
        $region14: #{tpu_custom_call.1} parent=11 // pred_check_branch
          %170 = sbr.rel (%p168) target = $region16
        $region15: #{tpu_custom_call.1} parent=11 // pred_region
          %p171 = scmp.lt.s32.totalorder %s20, 1
          %s172 = scalar_select %p171, %s20, 1
          %s173 = smul.addr %s172, 8
          %s174 = scalar_lea.vmem %s0, %s173
        $region16: #{tpu_custom_call.1} parent=11 // pred_fallthru
          _
        // Predicated region
        $region17: #{tpu_custom_call.1} parent=11 // pred_check
          %p175 = pneg %p75
        $region18: #{tpu_custom_call.1} parent=11 // pred_check_branch
          %177 = sbr.rel (%p175) target = $region20
        $region19: #{tpu_custom_call.1} parent=11 // pred_region
          %p178 = scmp.lt.s32.totalorder %s21, 0
          %s179 = scalar_select %p178, %s21, 0
          %s180 = smul.addr %s179, 8
          %s181 = scalar_lea.vmem %s1, %s180
        $region20: #{tpu_custom_call.1} parent=11 // pred_fallthru
          _
        // Predicated region
        $region21: #{tpu_custom_call.1} parent=11 // pred_check
          %p182 = pneg %p101
        $region22: #{tpu_custom_call.1} parent=11 // pred_check_branch
          %184 = sbr.rel (%p182) target = $region24
        $region23: #{tpu_custom_call.1} parent=11 // pred_region
          %p185 = scmp.lt.s32.totalorder %s21, 0
          %s186 = scalar_select %p185, %s21, 0
          %s187 = smul.addr %s186, 8
          %s188 = scalar_lea.vmem %s2, %s187
        $region24: #{tpu_custom_call.1} parent=11 // pred_fallthru
          _
        // Predicated region
        $region25: #{tpu_custom_call.1} parent=11 // pred_check
          %p189 = pneg %p127
        $region26: #{tpu_custom_call.1} parent=11 // pred_check_branch
          %191 = sbr.rel (%p189) target = $region28
        $region27: #{tpu_custom_call.1} parent=11 // pred_region
          %s192 = smul.u32 8, %s21
          %p193 = scmp.lt.s32.totalorder %s192, 7
          %s194 = scalar_select %p193, %s192, 7
          %s195 = smul.addr %s194, 8
          %s196 = scalar_lea.vmem %s3, %s195
          %s197 = smul.u32 8, %s21
        $region28: #{tpu_custom_call.1} parent=11 // pred_fallthru
          _
      $region12: #{tpu_custom_call.1} parent=5 // pred_fallthru
        _
      %p198 = scmp.lt.s32.totalorder %s11, 2
      // Predicated region
      $region29: #{tpu_custom_call.1} parent=5 // pred_check
        %p199 = pneg %p198
      $region30: #{tpu_custom_call.1} parent=5 // pred_check_branch
        %201 = sbr.rel (%p199) target = $region32
      $region31: #{tpu_custom_call.1} parent=5 // pred_region
        _
      $region32: #{tpu_custom_call.1} parent=5 // pred_fallthru
        _
      %p202 = scmp.le.s32.totalorder 1, %s11
      %p203 = scmp.lt.s32.totalorder %s11, 3
      %p204 = pnand %p202, %p203
      %p205 = pneg %p204
      // Predicated region
      $region33: #{tpu_custom_call.1} parent=5 // pred_check
        _
      $region34: #{tpu_custom_call.1} parent=5 // pred_check_branch
        %207 = sbr.rel (%p204) target = $region36
      $region35: #{tpu_custom_call.1} parent=5 // pred_region
        %s208 = ssub.s32 %s11, 1
        %p209 = scmp.lt.s32.totalorder %s20, 1
        %s210 = scalar_select %p209, %s20, 1
        %s211 = smul.addr %s210, 8
        %s212 = scalar_lea.vmem %s0, %s211
        %p213 = pneg %p49
        %p214 = pneg %p46
        %p215 = scmp.lt.s32.totalorder %s21, 0
        %s216 = scalar_select %p215, %s21, 0
        %s217 = smul.addr %s216, 8
        %s218 = scalar_lea.vmem %s1, %s217
        %p219 = pneg %p75
        %p220 = pneg %p72
        %p221 = scmp.lt.s32.totalorder %s21, 0
        %s222 = scalar_select %p221, %s21, 0
        %s223 = smul.addr %s222, 8
        %s224 = scalar_lea.vmem %s2, %s223
        %p225 = pneg %p101
        %p226 = pneg %p98
        %s227 = smul.u32 8, %s21
        %p228 = scmp.lt.s32.totalorder %s227, 7
        %s229 = scalar_select %p228, %s227, 7
        %s230 = smul.addr %s229, 8
        %s231 = scalar_lea.vmem %s3, %s230
        %p232 = pneg %p127
        %p233 = pneg %p124
        %p234 = pneg %p153
        %p235 = pneg %p150
        %p236 = scmp.lt.s32.totalorder %s20, 1
        %s237 = scalar_select %p236, %s20, 1
        %s238 = smul.addr %s237, 8
        %s239 = scalar_lea.vmem %s0, %s238
        %p240 = scmp.lt.s32.totalorder %s21, 0
        %s241 = scalar_select %p240, %s21, 0
        %s242 = smul.addr %s241, 8
        %s243 = scalar_lea.vmem %s1, %s242
        %p244 = scmp.lt.s32.totalorder %s21, 0
        %s245 = scalar_select %p244, %s21, 0
        %s246 = smul.addr %s245, 8
        %s247 = scalar_lea.vmem %s2, %s246
        %s248 = smul.u32 8, %s21
        %p249 = scmp.lt.s32.totalorder %s248, 7
        %s250 = scalar_select %p249, %s248, 7
        %s251 = smul.addr %s250, 8
        %s252 = scalar_lea.vmem %s3, %s251
        %s253 = smul.u32 8, %s21
        %p254 = scmp.eq.s32.totalorder %s21, 0
        // Predicated region
        $region37: #{tpu_custom_call.1} parent=35 // pred_check
          %p255 = pneg %p254
        $region38: #{tpu_custom_call.1} parent=35 // pred_check_branch
          %257 = sbr.rel (%p255) target = $region40
        $region39: #{tpu_custom_call.1} parent=35 // pred_region
          %vm258 = vcmask 261120
          %259 = vst.msk [vmem:[#allocation2] sm:$0xff] %vm258, 0.0
        $region40: #{tpu_custom_call.1} parent=35 // pred_fallthru
          _
        %v260 = vld [vmem:[%s239] sm:$0xff]
        %v261 = vld [vmem:[%s243] sm:$0xff]
        %v262 = vld [vmem:[%s243 + $0x8] sm:$0xff]
        %v263 = vld [vmem:[%s243 + $0x10] sm:$0xff]
        %v264 = vld [vmem:[%s243 + $0x18] sm:$0xff]
        %vm265 = vcmask 261120
        %v267 = vsel %vm265, %v260, 0
        %269 = vmatprep.subr.mxu0 0.0
        %270 = vmatpush1.msra.mxu0 %v261
        %271 = vmatprep.subr.mxu0 0.0
        %272 = vmatpush1.msra.mxu0 %v262
        %273 = vmatprep.subr.mxu0 0.0
        %274 = vmatpush1.msra.mxu0 %v263
        %275 = vmatprep.subr.mxu0 0.0
        %276 = vmatpush1.msra.mxu0 %v264
        %277 = vmatprep.subr.mxu0 0.0
        %278 = vmatpush1.msra.mxu0 0.0
        %279 = vmatprep.subr.mxu0 0.0
        %280 = vmatpush1.msra.mxu0 0.0
        %281 = vmatprep.subr.mxu0 0.0
        %282 = vmatpush1.msra.mxu0 0.0
        %283 = vmatprep.subr.mxu0 0.0
        %284 = vmatpush1.msra.mxu0 0.0
        %285 = vmatprep.subr.mxu0 0.0
        %286 = vmatpush1.msra.mxu0 0.0
        %287 = vmatprep.subr.mxu0 0.0
        %288 = vmatpush1.msra.mxu0 0.0
        %289 = vmatprep.subr.mxu0 0.0
        %290 = vmatpush1.msra.mxu0 0.0
        %291 = vmatprep.subr.mxu0 0.0
        %292 = vmatpush1.msra.mxu0 0.0
        %293 = vmatprep.subr.mxu0 0.0
        %294 = vmatpush1.msra.mxu0 0.0
        %295 = vmatprep.subr.mxu0 0.0
        %296 = vmatpush1.msra.mxu0 0.0
        %297 = vmatprep.subr.mxu0 0.0
        %298 = vmatpush1.msra.mxu0 0.0
        %299 = vmatprep.subr.mxu0 0.0
        %300 = vmatpush1.msra.mxu0 0.0
        %301 = vmatprep.subr.mxu0 0.0
        %302 = vmatpush1.msra.mxu0 0.0
        %303 = vmatprep.subr.mxu0 0.0
        %304 = vmatpush1.msra.mxu0 0.0
        %305 = vmatprep.subr.mxu0 0.0
        %306 = vmatpush1.msra.mxu0 0.0
        %307 = vmatprep.subr.mxu0 0.0
        %308 = vmatpush1.msra.mxu0 0.0
        %309 = vmatprep.subr.mxu0 0.0
        %310 = vmatpush1.msra.mxu0 0.0
        %311 = vmatprep.subr.mxu0 0.0
        %312 = vmatpush1.msra.mxu0 0.0
        %313 = vmatprep.subr.mxu0 0.0
        %314 = vmatpush1.msra.mxu0 0.0
        %315 = vmatprep.subr.mxu0 0.0
        %316 = vmatpush1.msra.mxu0 0.0
        %317 = vmatprep.subr.mxu0 0.0
        %318 = vmatpush1.msra.mxu0 0.0
        %319 = vmatprep.subr.mxu0 0.0
        %320 = vmatpush1.msra.mxu0 0.0
        %321 = vmatprep.subr.mxu0 0.0
        %322 = vmatpush1.msra.mxu0 0.0
        %323 = vmatprep.subr.mxu0 0.0
        %324 = vmatpush1.msra.mxu0 0.0
        %325 = vmatprep.subr.mxu0 0.0
        %326 = vmatpush1.msra.mxu0 0.0
        %327 = vmatprep.subr.mxu0 0.0
        %328 = vmatpush1.msra.mxu0 0.0
        %329 = vmatprep.subr.mxu0 0.0
        %330 = vmatpush1.msra.mxu0 0.0
        %331 = vmatprep.subr.mxu0 0.0
        %332 = vmatpush1.msra.mxu0 0.0
        %333 = vmatprep.mubr.f32.mxu0 0.0
        %334 = vmatmul.mubr.f32.gmra.mrb[0].mxu0 %v267
        %v335 = vpop.f32.mrb[0].mxu0
        %v336 = vadd.f32 0.0, %v335
        %v337 = vpop.f32.mrb[0].mxu0
        %338 = vdwg.mxu0
        %v339 = vld [vmem:[%s247] sm:$0xff]
        %v340 = vld [vmem:[%s247 + $0x8] sm:$0xff]
        %v341 = vld [vmem:[%s247 + $0x10] sm:$0xff]
        %v342 = vld [vmem:[%s247 + $0x18] sm:$0xff]
        %343 = vmatprep.subr.mxu0 0.0
        %344 = vmatpush1.msra.mxu0 %v339
        %345 = vmatprep.subr.mxu0 0.0
        %346 = vmatpush1.msra.mxu0 %v340
        %347 = vmatprep.subr.mxu0 0.0
        %348 = vmatpush1.msra.mxu0 %v341
        %349 = vmatprep.subr.mxu0 0.0
        %350 = vmatpush1.msra.mxu0 %v342
        %351 = vmatprep.subr.mxu0 0.0
        %352 = vmatpush1.msra.mxu0 0.0
        %353 = vmatprep.subr.mxu0 0.0
        %354 = vmatpush1.msra.mxu0 0.0
        %355 = vmatprep.subr.mxu0 0.0
        %356 = vmatpush1.msra.mxu0 0.0
        %357 = vmatprep.subr.mxu0 0.0
        %358 = vmatpush1.msra.mxu0 0.0
        %359 = vmatprep.subr.mxu0 0.0
        %360 = vmatpush1.msra.mxu0 0.0
        %361 = vmatprep.subr.mxu0 0.0
        %362 = vmatpush1.msra.mxu0 0.0
        %363 = vmatprep.subr.mxu0 0.0
        %364 = vmatpush1.msra.mxu0 0.0
        %365 = vmatprep.subr.mxu0 0.0
        %366 = vmatpush1.msra.mxu0 0.0
        %367 = vmatprep.subr.mxu0 0.0
        %368 = vmatpush1.msra.mxu0 0.0
        %369 = vmatprep.subr.mxu0 0.0
        %370 = vmatpush1.msra.mxu0 0.0
        %371 = vmatprep.subr.mxu0 0.0
        %372 = vmatpush1.msra.mxu0 0.0
        %373 = vmatprep.subr.mxu0 0.0
        %374 = vmatpush1.msra.mxu0 0.0
        %375 = vmatprep.subr.mxu0 0.0
        %376 = vmatpush1.msra.mxu0 0.0
        %377 = vmatprep.subr.mxu0 0.0
        %378 = vmatpush1.msra.mxu0 0.0
        %379 = vmatprep.subr.mxu0 0.0
        %380 = vmatpush1.msra.mxu0 0.0
        %381 = vmatprep.subr.mxu0 0.0
        %382 = vmatpush1.msra.mxu0 0.0
        %383 = vmatprep.subr.mxu0 0.0
        %384 = vmatpush1.msra.mxu0 0.0
        %385 = vmatprep.subr.mxu0 0.0
        %386 = vmatpush1.msra.mxu0 0.0
        %387 = vmatprep.subr.mxu0 0.0
        %388 = vmatpush1.msra.mxu0 0.0
        %389 = vmatprep.subr.mxu0 0.0
        %390 = vmatpush1.msra.mxu0 0.0
        %391 = vmatprep.subr.mxu0 0.0
        %392 = vmatpush1.msra.mxu0 0.0
        %393 = vmatprep.subr.mxu0 0.0
        %394 = vmatpush1.msra.mxu0 0.0
        %395 = vmatprep.subr.mxu0 0.0
        %396 = vmatpush1.msra.mxu0 0.0
        %397 = vmatprep.subr.mxu0 0.0
        %398 = vmatpush1.msra.mxu0 0.0
        %399 = vmatprep.subr.mxu0 0.0
        %400 = vmatpush1.msra.mxu0 0.0
        %401 = vmatprep.subr.mxu0 0.0
        %402 = vmatpush1.msra.mxu0 0.0
        %403 = vmatprep.subr.mxu0 0.0
        %404 = vmatpush1.msra.mxu0 0.0
        %405 = vmatprep.subr.mxu0 0.0
        %406 = vmatpush1.msra.mxu0 0.0
        %407 = vmatprep.mubr.f32.mxu0 0.0
        %408 = vmatmul.mubr.f32.gmra.mrb[0].mxu0 %v267
        %v409 = vpop.f32.mrb[0].mxu0
        %v410 = vadd.f32 0.0, %v409
        %v411 = vpop.f32.mrb[0].mxu0
        %412 = vdwg.mxu0
        %v413 = vxor.u32 %v336, 2147483648
        %v414 = vmul.f32 %v413, 1.442695
        %v415 = vpow.pop %v414
        %v416 = vadd.f32 %v415, 1.0
        %v417 = vrcp.pop %v416
        %v418 = vmul.f32 1.0, %v417
        %v419 = vmul.f32 %v336, %v418
        %v420 = vmul.f32 %v419, %v410
        %v421 = vld [vmem:[#allocation2] sm:$0xff]
        %v422 = vld [vmem:[%s252] sm:$0xff]
        %v423 = vld [vmem:[%s252 + $0x8] sm:$0xff]
        %v424 = vld [vmem:[%s252 + $0x10] sm:$0xff]
        %v425 = vld [vmem:[%s252 + $0x18] sm:$0xff]
        %v426 = vld [vmem:[%s252 + $0x20] sm:$0xff]
        %v427 = vld [vmem:[%s252 + $0x28] sm:$0xff]
        %v428 = vld [vmem:[%s252 + $0x30] sm:$0xff]
        %v429 = vld [vmem:[%s252 + $0x38] sm:$0xff]
        %vm430 = vcmask 523264
        %v432 = vsel %vm430, %v420, 0
        %434 = vmatprep.subr.mxu0 0.0
        %435 = vmatpush1.msra.mxu0 %v422
        %436 = vmatprep.subr.mxu0 0.0
        %437 = vmatpush1.msra.mxu0 %v423
        %438 = vmatprep.subr.mxu0 0.0
        %439 = vmatpush1.msra.mxu0 %v424
        %440 = vmatprep.subr.mxu0 0.0
        %441 = vmatpush1.msra.mxu0 %v425
        %442 = vmatprep.subr.mxu0 0.0
        %443 = vmatpush1.msra.mxu0 %v426
        %444 = vmatprep.subr.mxu0 0.0
        %445 = vmatpush1.msra.mxu0 %v427
        %446 = vmatprep.subr.mxu0 0.0
        %447 = vmatpush1.msra.mxu0 %v428
        %448 = vmatprep.subr.mxu0 0.0
        %449 = vmatpush1.msra.mxu0 %v429
        %450 = vmatprep.subr.mxu0 0.0
        %451 = vmatpush1.msra.mxu0 0.0
        %452 = vmatprep.subr.mxu0 0.0
        %453 = vmatpush1.msra.mxu0 0.0
        %454 = vmatprep.subr.mxu0 0.0
        %455 = vmatpush1.msra.mxu0 0.0
        %456 = vmatprep.subr.mxu0 0.0
        %457 = vmatpush1.msra.mxu0 0.0
        %458 = vmatprep.subr.mxu0 0.0
        %459 = vmatpush1.msra.mxu0 0.0
        %460 = vmatprep.subr.mxu0 0.0
        %461 = vmatpush1.msra.mxu0 0.0
        %462 = vmatprep.subr.mxu0 0.0
        %463 = vmatpush1.msra.mxu0 0.0
        %464 = vmatprep.subr.mxu0 0.0
        %465 = vmatpush1.msra.mxu0 0.0
        %466 = vmatprep.subr.mxu0 0.0
        %467 = vmatpush1.msra.mxu0 0.0
        %468 = vmatprep.subr.mxu0 0.0
        %469 = vmatpush1.msra.mxu0 0.0
        %470 = vmatprep.subr.mxu0 0.0
        %471 = vmatpush1.msra.mxu0 0.0
        %472 = vmatprep.subr.mxu0 0.0
        %473 = vmatpush1.msra.mxu0 0.0
        %474 = vmatprep.subr.mxu0 0.0
        %475 = vmatpush1.msra.mxu0 0.0
        %476 = vmatprep.subr.mxu0 0.0
        %477 = vmatpush1.msra.mxu0 0.0
        %478 = vmatprep.subr.mxu0 0.0
        %479 = vmatpush1.msra.mxu0 0.0
        %480 = vmatprep.subr.mxu0 0.0
        %481 = vmatpush1.msra.mxu0 0.0
        %482 = vmatprep.subr.mxu0 0.0
        %483 = vmatpush1.msra.mxu0 0.0
        %484 = vmatprep.subr.mxu0 0.0
        %485 = vmatpush1.msra.mxu0 0.0
        %486 = vmatprep.subr.mxu0 0.0
        %487 = vmatpush1.msra.mxu0 0.0
        %488 = vmatprep.subr.mxu0 0.0
        %489 = vmatpush1.msra.mxu0 0.0
        %490 = vmatprep.subr.mxu0 0.0
        %491 = vmatpush1.msra.mxu0 0.0
        %492 = vmatprep.subr.mxu0 0.0
        %493 = vmatpush1.msra.mxu0 0.0
        %494 = vmatprep.subr.mxu0 0.0
        %495 = vmatpush1.msra.mxu0 0.0
        %496 = vmatprep.subr.mxu0 0.0
        %497 = vmatpush1.msra.mxu0 0.0
        %498 = vmatprep.mubr.f32.mxu0 0.0
        %499 = vmatmul.mubr.f32.gmra.mrb[0].mxu0 %v432
        %v500 = vpop.f32.mrb[0].mxu0
        %v501 = vadd.f32 0.0, %v500
        %v502 = vpop.f32.mrb[0].mxu0
        %503 = vdwg.mxu0
        %v504 = vadd.f32 %v421, %v501
        %505 = vst.msk [vmem:[#allocation2] sm:$0xff] %vm265, %v504
        // Predicated region
        $region41: #{tpu_custom_call.1} parent=35 // pred_check
          %p506 = pneg %p254
        $region42: #{tpu_custom_call.1} parent=35 // pred_check_branch
          %508 = sbr.rel (%p506) target = $region44
        $region43: #{tpu_custom_call.1} parent=35 // pred_region
          %v509 = vld [vmem:[#allocation2] sm:$0xff]
          %510 = vst.msk [vmem:[#allocation3] sm:$0xff] %vm265, %v509
        $region44: #{tpu_custom_call.1} parent=35 // pred_fallthru
          _
        // Predicated region
        $region45: #{tpu_custom_call.1} parent=35 // pred_check
          %p511 = pneg %p150
        $region46: #{tpu_custom_call.1} parent=35 // pred_check_branch
          %513 = sbr.rel (%p511) target = $region48
        $region47: #{tpu_custom_call.1} parent=35 // pred_region
          %s515 = ssub.s32 128, 128
          %516 = vsyncadd [#allocation4], %s515
          %s517 = smul.addr %s20, 128
          %s518 = scalar_lea.hbm %s4, %s517
          %s520 = sshll.u32 [#allocation3], 4
          %s521 = int_to_ptr.vmem [resolvable:$true] %s520
          %523 = dma.vmem_to_hbm [thread:$0]  %s521, 128, %s518, [#allocation4]
        $region48: #{tpu_custom_call.1} parent=35 // pred_fallthru
          _
        // Predicated region
        $region49: #{tpu_custom_call.1} parent=35 // pred_check
          %p524 = pneg %p150
        $region50: #{tpu_custom_call.1} parent=35 // pred_check_branch
          %526 = sbr.rel (%p524) target = $region52
        $region51: #{tpu_custom_call.1} parent=35 // pred_region
          %527 = dma.done [#allocation4], 128
        $region52: #{tpu_custom_call.1} parent=35 // pred_fallthru
          _
      $region36: #{tpu_custom_call.1} parent=5 // pred_fallthru
        _
      %p528 = scmp.le.s32.totalorder 2, %s11
      // Predicated region
      $region53: #{tpu_custom_call.1} parent=5 // pred_check
        %p529 = pneg %p528
      $region54: #{tpu_custom_call.1} parent=5 // pred_check_branch
        %531 = sbr.rel (%p529) target = $region56
      $region55: #{tpu_custom_call.1} parent=5 // pred_region
        %s532 = ssub.s32 %s11, 2
      $region56: #{tpu_custom_call.1} parent=5 // pred_fallthru
        _
    $region6: #{tpu_custom_call.1} parent=1 // loop_footer
      %s15 = sadd.s32 1, %s11
    $region7: #{tpu_custom_call.1} parent=1 // loop_footer_branch
      %10 = sbr.rel target = $region3
    $region8: #{tpu_custom_call.1} parent=1 // loop_exit
      _
    %533 = vsyncpa [#allocation4], 1
    %s534 = scalar_lea.sflag [#allocation4], 1
    %535 = vsyncpa %s534, 1

// kernel: tpu_custom_call.1
$region0: #{tpu_custom_call.1}
  #allocation0 [shape = 'u32[]', space=smem, size = 0x4, offset = 0x4, fixed_abs, tag = 'smem constant byte address 0x4 - core index']
  #allocation1 [shape = 'u32[144,128]{1,0:T(1,128)}', space=vmem, size = 0x12000, scoped, tag = 'internal scratch']
  #allocation2 [shape = 'f32[8,32]{1,0:T(8,128)}', space=vmem, size = 0x1000, scoped, tag = 'scratch operand']
  %s0 = inlined_call_operand.vmem [shape: f32[16,32], index: 0, kind: input, shape index: {}]
  %s1 = inlined_call_operand.vmem [shape: f32[32,64], index: 1, kind: input, shape index: {}]
  %s2 = inlined_call_operand.vmem [shape: f32[32,64], index: 2, kind: input, shape index: {}]
  %s3 = inlined_call_operand.vmem [shape: f32[64,32], index: 3, kind: input, shape index: {}]
  %s4 = inlined_call_operand.hbm [shape: f32[16,32], index: 4, kind: output, shape index: {}]
  %s5 = sld [smem:[#allocation0]]
  $region57: #{tpu_custom_call.1} parent=0
    _
  %s7 = ssub.s32 1, %s5
  %s8 = scalar_select 0, %s7, %s5
  $region1: #{tpu_custom_call.1} parent=0
    #allocation3 [shape = 'u8[8192]{0}', space=vmem, size = 0x2000, scoped, tag = 'output window, operand 0']
    #allocation4 [shape = 's32[2]{0}', space=sflag, size = 0x8, scoped, tag = 'scoped memory for tpu_custom_call.1']
    %9 = vsyncpa [#allocation4], 0
    %s10 = scalar_lea.sflag [#allocation4], 1
    %11 = vsyncpa %s10, 0
    loop: start=0, step=1, limit=4
    $region2: #{tpu_custom_call.1} parent=1 // loop_pre_header
      _
    $region3: #{tpu_custom_call.1} parent=1 // loop_header
      %s13 = sphi 0, %s17
      %p14 = scmp.ge.s32.totalorder %s13, 4
      %s20 = sphi 0, %s32
      %s21 = sphi 0, %s28
      %s22 = sphi 0, %s20
      %s23 = sphi 0, %s21
      %s24 = sphi 0, %s22
      %s25 = sphi 0, %s23
      %s35 = sphi 0, %s37
      %s38 = sphi 0, %s35
      %s39 = sphi 0, %s38
      %s55 = sphi 0, %s39
      %s61 = sphi 0, %s63
      %s64 = sphi 0, %s61
      %s65 = sphi 0, %s64
      %s81 = sphi 0, %s65
      %s87 = sphi 0, %s89
      %s90 = sphi 0, %s87
      %s91 = sphi 0, %s90
      %s107 = sphi 0, %s91
      %s113 = sphi 0, %s115
      %s116 = sphi 0, %s113
      %s117 = sphi 0, %s116
      %s133 = sphi 0, %s117
      %s139 = sphi 0, %s141
      %s142 = sphi 0, %s139
      %s143 = sphi 0, %s142
      %s159 = sphi 0, %s143
    $region4: #{tpu_custom_call.1} parent=1 // loop_header_branch
      %16 = sbr.rel (%p14) target = $region8
    $region5: #{tpu_custom_call.1} parent=1 // loop_body
      %s18 = ssub.s32 %s13, 1
      %s19 = ssub.s32 %s13, 2
      %s26 = sadd.s32 1, %s21
      %p27 = scmp.ge.s32.totalorder %s26, 1
      %s28 = scalar_select %p27, 0, %s26
      %s29 = sadd.s32 1, %s20
      %s30 = scalar_select %p27, %s29, %s20
      %p31 = scmp.ge.s32.totalorder %s30, 2
      %s32 = scalar_select %p31, 0, %s30
      %s33 = ssub.s32 %s20, %s32
      %p34 = scmp.eq.s32.totalorder %s33, 0
      %s36 = sadd.s32 %s35, 1
      %s37 = scalar_select %p34, %s35, %s36
      %p40 = pneg %p34
      %p41 = scmp.eq.s32.totalorder %s13, 1
      %p42 = por %p40, %p41
      %p43 = scmp.ne.s32.totalorder %s35, %s38
      %p44 = scmp.eq.s32.totalorder %s13, 0
      %p45 = por %p43, %p44
      %p46 = scmp.ne.s32.totalorder %s35, %s38
      %p47 = scmp.eq.s32.totalorder %s18, 1
      %p48 = por %p46, %p47
      %p49 = scmp.ne.s32.totalorder %s38, %s39
      %p50 = scmp.eq.s32.totalorder %s18, 0
      %p51 = por %p49, %p50
      %p52 = scmp.ne.s32.totalorder %s38, %s39
      %p53 = scmp.eq.s32.totalorder %s19, 1
      %p54 = por %p52, %p53
      %p56 = scmp.ne.s32.totalorder %s39, %s55
      %p57 = scmp.eq.s32.totalorder %s19, 0
      %p58 = por %p56, %p57
      %s59 = ssub.s32 %s21, %s28
      %p60 = scmp.eq.s32.totalorder %s59, 0
      %s62 = sadd.s32 %s61, 1
      %s63 = scalar_select %p60, %s61, %s62
      %p66 = pneg %p60
      %p67 = scmp.eq.s32.totalorder %s13, 1
      %p68 = por %p66, %p67
      %p69 = scmp.ne.s32.totalorder %s61, %s64
      %p70 = scmp.eq.s32.totalorder %s13, 0
      %p71 = por %p69, %p70
      %p72 = scmp.ne.s32.totalorder %s61, %s64
      %p73 = scmp.eq.s32.totalorder %s18, 1
      %p74 = por %p72, %p73
      %p75 = scmp.ne.s32.totalorder %s64, %s65
      %p76 = scmp.eq.s32.totalorder %s18, 0
      %p77 = por %p75, %p76
      %p78 = scmp.ne.s32.totalorder %s64, %s65
      %p79 = scmp.eq.s32.totalorder %s19, 1
      %p80 = por %p78, %p79
      %p82 = scmp.ne.s32.totalorder %s65, %s81
      %p83 = scmp.eq.s32.totalorder %s19, 0
      %p84 = por %p82, %p83
      %s85 = ssub.s32 %s21, %s28
      %p86 = scmp.eq.s32.totalorder %s85, 0
      %s88 = sadd.s32 %s87, 1
      %s89 = scalar_select %p86, %s87, %s88
      %p92 = pneg %p86
      %p93 = scmp.eq.s32.totalorder %s13, 1
      %p94 = por %p92, %p93
      %p95 = scmp.ne.s32.totalorder %s87, %s90
      %p96 = scmp.eq.s32.totalorder %s13, 0
      %p97 = por %p95, %p96
      %p98 = scmp.ne.s32.totalorder %s87, %s90
      %p99 = scmp.eq.s32.totalorder %s18, 1
      %p100 = por %p98, %p99
      %p101 = scmp.ne.s32.totalorder %s90, %s91
      %p102 = scmp.eq.s32.totalorder %s18, 0
      %p103 = por %p101, %p102
      %p104 = scmp.ne.s32.totalorder %s90, %s91
      %p105 = scmp.eq.s32.totalorder %s19, 1
      %p106 = por %p104, %p105
      %p108 = scmp.ne.s32.totalorder %s91, %s107
      %p109 = scmp.eq.s32.totalorder %s19, 0
      %p110 = por %p108, %p109
      %s111 = ssub.s32 %s21, %s28
      %p112 = scmp.eq.s32.totalorder %s111, 0
      %s114 = sadd.s32 %s113, 1
      %s115 = scalar_select %p112, %s113, %s114
      %p118 = pneg %p112
      %p119 = scmp.eq.s32.totalorder %s13, 1
      %p120 = por %p118, %p119
      %p121 = scmp.ne.s32.totalorder %s113, %s116
      %p122 = scmp.eq.s32.totalorder %s13, 0
      %p123 = por %p121, %p122
      %p124 = scmp.ne.s32.totalorder %s113, %s116
      %p125 = scmp.eq.s32.totalorder %s18, 1
      %p126 = por %p124, %p125
      %p127 = scmp.ne.s32.totalorder %s116, %s117
      %p128 = scmp.eq.s32.totalorder %s18, 0
      %p129 = por %p127, %p128
      %p130 = scmp.ne.s32.totalorder %s116, %s117
      %p131 = scmp.eq.s32.totalorder %s19, 1
      %p132 = por %p130, %p131
      %p134 = scmp.ne.s32.totalorder %s117, %s133
      %p135 = scmp.eq.s32.totalorder %s19, 0
      %p136 = por %p134, %p135
      %s137 = ssub.s32 %s20, %s32
      %p138 = scmp.eq.s32.totalorder %s137, 0
      %s140 = sadd.s32 %s139, 1
      %s141 = scalar_select %p138, %s139, %s140
      %p144 = pneg %p138
      %p145 = scmp.eq.s32.totalorder %s13, 1
      %p146 = por %p144, %p145
      %p147 = scmp.ne.s32.totalorder %s139, %s142
      %p148 = scmp.eq.s32.totalorder %s13, 0
      %p149 = por %p147, %p148
      %p150 = scmp.ne.s32.totalorder %s139, %s142
      %p151 = scmp.eq.s32.totalorder %s18, 1
      %p152 = por %p150, %p151
      %p153 = scmp.ne.s32.totalorder %s142, %s143
      %p154 = scmp.eq.s32.totalorder %s18, 0
      %p155 = por %p153, %p154
      %p156 = scmp.ne.s32.totalorder %s142, %s143
      %p157 = scmp.eq.s32.totalorder %s19, 1
      %p158 = por %p156, %p157
      %p160 = scmp.ne.s32.totalorder %s143, %s159
      %p161 = scmp.eq.s32.totalorder %s19, 0
      %p162 = por %p160, %p161
      %p163 = scmp.le.s32.totalorder 1, %s13
      %p164 = scmp.lt.s32.totalorder %s13, 3
      %p165 = pnand %p163, %p164
      %p166 = pneg %p165
      // Predicated region
      $region9: #{tpu_custom_call.1} parent=5 // pred_check
        _
      $region10: #{tpu_custom_call.1} parent=5 // pred_check_branch
        %168 = sbr.rel (%p165) target = $region12
      $region11: #{tpu_custom_call.1} parent=5 // pred_region
        %s169 = ssub.s32 %s13, 1
        // Predicated region
        $region13: #{tpu_custom_call.1} parent=11 // pred_check
          %p170 = pneg %p77
        $region14: #{tpu_custom_call.1} parent=11 // pred_check_branch
          %172 = sbr.rel (%p170) target = $region16
        $region15: #{tpu_custom_call.1} parent=11 // pred_region
          %p173 = scmp.lt.s32.totalorder %s23, 0
          %s174 = scalar_select %p173, %s23, 0
          %s175 = smul.addr %s174, 8
          %s176 = scalar_lea.vmem %s1, %s175
        $region16: #{tpu_custom_call.1} parent=11 // pred_fallthru
          _
        // Predicated region
        $region17: #{tpu_custom_call.1} parent=11 // pred_check
          %p177 = pneg %p103
        $region18: #{tpu_custom_call.1} parent=11 // pred_check_branch
          %179 = sbr.rel (%p177) target = $region20
        $region19: #{tpu_custom_call.1} parent=11 // pred_region
          %p180 = scmp.lt.s32.totalorder %s23, 0
          %s181 = scalar_select %p180, %s23, 0
          %s182 = smul.addr %s181, 8
          %s183 = scalar_lea.vmem %s2, %s182
        $region20: #{tpu_custom_call.1} parent=11 // pred_fallthru
          _
        // Predicated region
        $region21: #{tpu_custom_call.1} parent=11 // pred_check
          %p184 = pneg %p129
        $region22: #{tpu_custom_call.1} parent=11 // pred_check_branch
          %186 = sbr.rel (%p184) target = $region24
        $region23: #{tpu_custom_call.1} parent=11 // pred_region
          %s187 = smul.u32 8, %s23
          %p188 = scmp.lt.s32.totalorder %s187, 7
          %s189 = scalar_select %p188, %s187, 7
          %s190 = smul.addr %s189, 8
          %s191 = scalar_lea.vmem %s3, %s190
          %s192 = smul.u32 8, %s23
        $region24: #{tpu_custom_call.1} parent=11 // pred_fallthru
          _
      $region12: #{tpu_custom_call.1} parent=5 // pred_fallthru
        _
      %p193 = scmp.lt.s32.totalorder %s13, 2
      // Predicated region
      $region25: #{tpu_custom_call.1} parent=5 // pred_check
        %p194 = pneg %p193
      $region26: #{tpu_custom_call.1} parent=5 // pred_check_branch
        %196 = sbr.rel (%p194) target = $region28
      $region27: #{tpu_custom_call.1} parent=5 // pred_region
        // Predicated region
        $region29: #{tpu_custom_call.1} parent=27 // pred_check
          %p197 = pneg %p45
        $region30: #{tpu_custom_call.1} parent=27 // pred_check_branch
          %199 = sbr.rel (%p197) target = $region32
        $region31: #{tpu_custom_call.1} parent=27 // pred_region
          %p200 = scmp.lt.s32.totalorder %s20, 1
          %s201 = scalar_select %p200, %s20, 1
          %s202 = smul.addr %s201, 8
          %s203 = scalar_lea.vmem %s0, %s202
        $region32: #{tpu_custom_call.1} parent=27 // pred_fallthru
          _
      $region28: #{tpu_custom_call.1} parent=5 // pred_fallthru
        _
      %p204 = scmp.le.s32.totalorder 1, %s13
      %p205 = scmp.lt.s32.totalorder %s13, 3
      %p206 = pnand %p204, %p205
      %p207 = pneg %p206
      // Predicated region
      $region33: #{tpu_custom_call.1} parent=5 // pred_check
        _
      $region34: #{tpu_custom_call.1} parent=5 // pred_check_branch
        %209 = sbr.rel (%p206) target = $region36
      $region35: #{tpu_custom_call.1} parent=5 // pred_region
        %s210 = ssub.s32 %s13, 1
        %p211 = scmp.lt.s32.totalorder %s22, 1
        %s212 = scalar_select %p211, %s22, 1
        %s213 = smul.addr %s212, 8
        %s214 = scalar_lea.vmem %s0, %s213
        %p215 = pneg %p51
        %p216 = pneg %p48
        %p217 = scmp.lt.s32.totalorder %s23, 0
        %s218 = scalar_select %p217, %s23, 0
        %s219 = smul.addr %s218, 8
        %s220 = scalar_lea.vmem %s1, %s219
        %p221 = pneg %p77
        %p222 = pneg %p74
        %p223 = scmp.lt.s32.totalorder %s23, 0
        %s224 = scalar_select %p223, %s23, 0
        %s225 = smul.addr %s224, 8
        %s226 = scalar_lea.vmem %s2, %s225
        %p227 = pneg %p103
        %p228 = pneg %p100
        %s229 = smul.u32 8, %s23
        %p230 = scmp.lt.s32.totalorder %s229, 7
        %s231 = scalar_select %p230, %s229, 7
        %s232 = smul.addr %s231, 8
        %s233 = scalar_lea.vmem %s3, %s232
        %p234 = pneg %p129
        %p235 = pneg %p126
        %p236 = pneg %p155
        %p237 = pneg %p152
        %s238 = sand.u32 %s142, 1
        %s239 = scalar_lea.sflag [#allocation4], %s238
        %s240 = sand.u32 %s142, 1
        %s241 = smul.addr %s240, 8
        %s242 = scalar_lea.vmem [#allocation3], %s241
        %p243 = scmp.lt.s32.totalorder %s22, 1
        %s244 = scalar_select %p243, %s22, 1
        %s245 = smul.addr %s244, 8
        %s246 = scalar_lea.vmem %s0, %s245
        %p247 = scmp.lt.s32.totalorder %s23, 0
        %s248 = scalar_select %p247, %s23, 0
        %s249 = smul.addr %s248, 8
        %s250 = scalar_lea.vmem %s1, %s249
        %p251 = scmp.lt.s32.totalorder %s23, 0
        %s252 = scalar_select %p251, %s23, 0
        %s253 = smul.addr %s252, 8
        %s254 = scalar_lea.vmem %s2, %s253
        %s255 = smul.u32 8, %s23
        %p256 = scmp.lt.s32.totalorder %s255, 7
        %s257 = scalar_select %p256, %s255, 7
        %s258 = smul.addr %s257, 8
        %s259 = scalar_lea.vmem %s3, %s258
        %s260 = smul.u32 8, %s23
        %p261 = scmp.eq.s32.totalorder %s23, 0
        // Predicated region
        $region37: #{tpu_custom_call.1} parent=35 // pred_check
          %p262 = pneg %p261
        $region38: #{tpu_custom_call.1} parent=35 // pred_check_branch
          %264 = sbr.rel (%p262) target = $region40
        $region39: #{tpu_custom_call.1} parent=35 // pred_region
          %vm265 = vcmask 261120
          %266 = vst.msk [vmem:[#allocation2] sm:$0xff] %vm265, 0.0
        $region40: #{tpu_custom_call.1} parent=35 // pred_fallthru
          _
        %v267 = vld [vmem:[%s246] sm:$0xff]
        %v268 = vld [vmem:[%s250] sm:$0xff]
        %v269 = vld [vmem:[%s250 + $0x8] sm:$0xff]
        %v270 = vld [vmem:[%s250 + $0x10] sm:$0xff]
        %v271 = vld [vmem:[%s250 + $0x18] sm:$0xff]
        %vm272 = vcmask 261120
        %v274 = vsel %vm272, %v267, 0
        %276 = vmatprep.subr.mxu0 0.0
        %277 = vmatpush1.msra.mxu0 %v268
        %278 = vmatprep.subr.mxu0 0.0
        %279 = vmatpush1.msra.mxu0 %v269
        %280 = vmatprep.subr.mxu0 0.0
        %281 = vmatpush1.msra.mxu0 %v270
        %282 = vmatprep.subr.mxu0 0.0
        %283 = vmatpush1.msra.mxu0 %v271
        %284 = vmatprep.subr.mxu0 0.0
        %285 = vmatpush1.msra.mxu0 0.0
        %286 = vmatprep.subr.mxu0 0.0
        %287 = vmatpush1.msra.mxu0 0.0
        %288 = vmatprep.subr.mxu0 0.0
        %289 = vmatpush1.msra.mxu0 0.0
        %290 = vmatprep.subr.mxu0 0.0
        %291 = vmatpush1.msra.mxu0 0.0
        %292 = vmatprep.subr.mxu0 0.0
        %293 = vmatpush1.msra.mxu0 0.0
        %294 = vmatprep.subr.mxu0 0.0
        %295 = vmatpush1.msra.mxu0 0.0
        %296 = vmatprep.subr.mxu0 0.0
        %297 = vmatpush1.msra.mxu0 0.0
        %298 = vmatprep.subr.mxu0 0.0
        %299 = vmatpush1.msra.mxu0 0.0
        %300 = vmatprep.subr.mxu0 0.0
        %301 = vmatpush1.msra.mxu0 0.0
        %302 = vmatprep.subr.mxu0 0.0
        %303 = vmatpush1.msra.mxu0 0.0
        %304 = vmatprep.subr.mxu0 0.0
        %305 = vmatpush1.msra.mxu0 0.0
        %306 = vmatprep.subr.mxu0 0.0
        %307 = vmatpush1.msra.mxu0 0.0
        %308 = vmatprep.subr.mxu0 0.0
        %309 = vmatpush1.msra.mxu0 0.0
        %310 = vmatprep.subr.mxu0 0.0
        %311 = vmatpush1.msra.mxu0 0.0
        %312 = vmatprep.subr.mxu0 0.0
        %313 = vmatpush1.msra.mxu0 0.0
        %314 = vmatprep.subr.mxu0 0.0
        %315 = vmatpush1.msra.mxu0 0.0
        %316 = vmatprep.subr.mxu0 0.0
        %317 = vmatpush1.msra.mxu0 0.0
        %318 = vmatprep.subr.mxu0 0.0
        %319 = vmatpush1.msra.mxu0 0.0
        %320 = vmatprep.subr.mxu0 0.0
        %321 = vmatpush1.msra.mxu0 0.0
        %322 = vmatprep.subr.mxu0 0.0
        %323 = vmatpush1.msra.mxu0 0.0
        %324 = vmatprep.subr.mxu0 0.0
        %325 = vmatpush1.msra.mxu0 0.0
        %326 = vmatprep.subr.mxu0 0.0
        %327 = vmatpush1.msra.mxu0 0.0
        %328 = vmatprep.subr.mxu0 0.0
        %329 = vmatpush1.msra.mxu0 0.0
        %330 = vmatprep.subr.mxu0 0.0
        %331 = vmatpush1.msra.mxu0 0.0
        %332 = vmatprep.subr.mxu0 0.0
        %333 = vmatpush1.msra.mxu0 0.0
        %334 = vmatprep.subr.mxu0 0.0
        %335 = vmatpush1.msra.mxu0 0.0
        %336 = vmatprep.subr.mxu0 0.0
        %337 = vmatpush1.msra.mxu0 0.0
        %338 = vmatprep.subr.mxu0 0.0
        %339 = vmatpush1.msra.mxu0 0.0
        %340 = vmatprep.mubr.f32.mxu0 0.0
        %341 = vmatmul.mubr.f32.gmra.mrb[0].mxu0 %v274
        %v342 = vpop.f32.mrb[0].mxu0
        %v343 = vadd.f32 0.0, %v342
        %v344 = vpop.f32.mrb[0].mxu0
        %345 = vdwg.mxu0
        %v346 = vld [vmem:[%s254] sm:$0xff]
        %v347 = vld [vmem:[%s254 + $0x8] sm:$0xff]
        %v348 = vld [vmem:[%s254 + $0x10] sm:$0xff]
        %v349 = vld [vmem:[%s254 + $0x18] sm:$0xff]
        %350 = vmatprep.subr.mxu0 0.0
        %351 = vmatpush1.msra.mxu0 %v346
        %352 = vmatprep.subr.mxu0 0.0
        %353 = vmatpush1.msra.mxu0 %v347
        %354 = vmatprep.subr.mxu0 0.0
        %355 = vmatpush1.msra.mxu0 %v348
        %356 = vmatprep.subr.mxu0 0.0
        %357 = vmatpush1.msra.mxu0 %v349
        %358 = vmatprep.subr.mxu0 0.0
        %359 = vmatpush1.msra.mxu0 0.0
        %360 = vmatprep.subr.mxu0 0.0
        %361 = vmatpush1.msra.mxu0 0.0
        %362 = vmatprep.subr.mxu0 0.0
        %363 = vmatpush1.msra.mxu0 0.0
        %364 = vmatprep.subr.mxu0 0.0
        %365 = vmatpush1.msra.mxu0 0.0
        %366 = vmatprep.subr.mxu0 0.0
        %367 = vmatpush1.msra.mxu0 0.0
        %368 = vmatprep.subr.mxu0 0.0
        %369 = vmatpush1.msra.mxu0 0.0
        %370 = vmatprep.subr.mxu0 0.0
        %371 = vmatpush1.msra.mxu0 0.0
        %372 = vmatprep.subr.mxu0 0.0
        %373 = vmatpush1.msra.mxu0 0.0
        %374 = vmatprep.subr.mxu0 0.0
        %375 = vmatpush1.msra.mxu0 0.0
        %376 = vmatprep.subr.mxu0 0.0
        %377 = vmatpush1.msra.mxu0 0.0
        %378 = vmatprep.subr.mxu0 0.0
        %379 = vmatpush1.msra.mxu0 0.0
        %380 = vmatprep.subr.mxu0 0.0
        %381 = vmatpush1.msra.mxu0 0.0
        %382 = vmatprep.subr.mxu0 0.0
        %383 = vmatpush1.msra.mxu0 0.0
        %384 = vmatprep.subr.mxu0 0.0
        %385 = vmatpush1.msra.mxu0 0.0
        %386 = vmatprep.subr.mxu0 0.0
        %387 = vmatpush1.msra.mxu0 0.0
        %388 = vmatprep.subr.mxu0 0.0
        %389 = vmatpush1.msra.mxu0 0.0
        %390 = vmatprep.subr.mxu0 0.0
        %391 = vmatpush1.msra.mxu0 0.0
        %392 = vmatprep.subr.mxu0 0.0
        %393 = vmatpush1.msra.mxu0 0.0
        %394 = vmatprep.subr.mxu0 0.0
        %395 = vmatpush1.msra.mxu0 0.0
        %396 = vmatprep.subr.mxu0 0.0
        %397 = vmatpush1.msra.mxu0 0.0
        %398 = vmatprep.subr.mxu0 0.0
        %399 = vmatpush1.msra.mxu0 0.0
        %400 = vmatprep.subr.mxu0 0.0
        %401 = vmatpush1.msra.mxu0 0.0
        %402 = vmatprep.subr.mxu0 0.0
        %403 = vmatpush1.msra.mxu0 0.0
        %404 = vmatprep.subr.mxu0 0.0
        %405 = vmatpush1.msra.mxu0 0.0
        %406 = vmatprep.subr.mxu0 0.0
        %407 = vmatpush1.msra.mxu0 0.0
        %408 = vmatprep.subr.mxu0 0.0
        %409 = vmatpush1.msra.mxu0 0.0
        %410 = vmatprep.subr.mxu0 0.0
        %411 = vmatpush1.msra.mxu0 0.0
        %412 = vmatprep.subr.mxu0 0.0
        %413 = vmatpush1.msra.mxu0 0.0
        %414 = vmatprep.mubr.f32.mxu0 0.0
        %415 = vmatmul.mubr.f32.gmra.mrb[0].mxu0 %v274
        %v416 = vpop.f32.mrb[0].mxu0
        %v417 = vadd.f32 0.0, %v416
        %v418 = vpop.f32.mrb[0].mxu0
        %419 = vdwg.mxu0
        %v420 = vxor.u32 %v343, 2147483648
        %v421 = vmul.f32 %v420, 1.442695
        %v422 = vpow.pop %v421
        %v423 = vadd.f32 %v422, 1.0
        %v424 = vrcp.pop %v423
        %v425 = vmul.f32 1.0, %v424
        %v426 = vmul.f32 %v343, %v425
        %v427 = vmul.f32 %v426, %v417
        %v428 = vld [vmem:[#allocation2] sm:$0xff]
        %v429 = vld [vmem:[%s259] sm:$0xff]
        %v430 = vld [vmem:[%s259 + $0x8] sm:$0xff]
        %v431 = vld [vmem:[%s259 + $0x10] sm:$0xff]
        %v432 = vld [vmem:[%s259 + $0x18] sm:$0xff]
        %v433 = vld [vmem:[%s259 + $0x20] sm:$0xff]
        %v434 = vld [vmem:[%s259 + $0x28] sm:$0xff]
        %v435 = vld [vmem:[%s259 + $0x30] sm:$0xff]
        %v436 = vld [vmem:[%s259 + $0x38] sm:$0xff]
        %vm437 = vcmask 523264
        %v439 = vsel %vm437, %v427, 0
        %441 = vmatprep.subr.mxu0 0.0
        %442 = vmatpush1.msra.mxu0 %v429
        %443 = vmatprep.subr.mxu0 0.0
        %444 = vmatpush1.msra.mxu0 %v430
        %445 = vmatprep.subr.mxu0 0.0
        %446 = vmatpush1.msra.mxu0 %v431
        %447 = vmatprep.subr.mxu0 0.0
        %448 = vmatpush1.msra.mxu0 %v432
        %449 = vmatprep.subr.mxu0 0.0
        %450 = vmatpush1.msra.mxu0 %v433
        %451 = vmatprep.subr.mxu0 0.0
        %452 = vmatpush1.msra.mxu0 %v434
        %453 = vmatprep.subr.mxu0 0.0
        %454 = vmatpush1.msra.mxu0 %v435
        %455 = vmatprep.subr.mxu0 0.0
        %456 = vmatpush1.msra.mxu0 %v436
        %457 = vmatprep.subr.mxu0 0.0
        %458 = vmatpush1.msra.mxu0 0.0
        %459 = vmatprep.subr.mxu0 0.0
        %460 = vmatpush1.msra.mxu0 0.0
        %461 = vmatprep.subr.mxu0 0.0
        %462 = vmatpush1.msra.mxu0 0.0
        %463 = vmatprep.subr.mxu0 0.0
        %464 = vmatpush1.msra.mxu0 0.0
        %465 = vmatprep.subr.mxu0 0.0
        %466 = vmatpush1.msra.mxu0 0.0
        %467 = vmatprep.subr.mxu0 0.0
        %468 = vmatpush1.msra.mxu0 0.0
        %469 = vmatprep.subr.mxu0 0.0
        %470 = vmatpush1.msra.mxu0 0.0
        %471 = vmatprep.subr.mxu0 0.0
        %472 = vmatpush1.msra.mxu0 0.0
        %473 = vmatprep.subr.mxu0 0.0
        %474 = vmatpush1.msra.mxu0 0.0
        %475 = vmatprep.subr.mxu0 0.0
        %476 = vmatpush1.msra.mxu0 0.0
        %477 = vmatprep.subr.mxu0 0.0
        %478 = vmatpush1.msra.mxu0 0.0
        %479 = vmatprep.subr.mxu0 0.0
        %480 = vmatpush1.msra.mxu0 0.0
        %481 = vmatprep.subr.mxu0 0.0
        %482 = vmatpush1.msra.mxu0 0.0
        %483 = vmatprep.subr.mxu0 0.0
        %484 = vmatpush1.msra.mxu0 0.0
        %485 = vmatprep.subr.mxu0 0.0
        %486 = vmatpush1.msra.mxu0 0.0
        %487 = vmatprep.subr.mxu0 0.0
        %488 = vmatpush1.msra.mxu0 0.0
        %489 = vmatprep.subr.mxu0 0.0
        %490 = vmatpush1.msra.mxu0 0.0
        %491 = vmatprep.subr.mxu0 0.0
        %492 = vmatpush1.msra.mxu0 0.0
        %493 = vmatprep.subr.mxu0 0.0
        %494 = vmatpush1.msra.mxu0 0.0
        %495 = vmatprep.subr.mxu0 0.0
        %496 = vmatpush1.msra.mxu0 0.0
        %497 = vmatprep.subr.mxu0 0.0
        %498 = vmatpush1.msra.mxu0 0.0
        %499 = vmatprep.subr.mxu0 0.0
        %500 = vmatpush1.msra.mxu0 0.0
        %501 = vmatprep.subr.mxu0 0.0
        %502 = vmatpush1.msra.mxu0 0.0
        %503 = vmatprep.subr.mxu0 0.0
        %504 = vmatpush1.msra.mxu0 0.0
        %505 = vmatprep.mubr.f32.mxu0 0.0
        %506 = vmatmul.mubr.f32.gmra.mrb[0].mxu0 %v439
        %v507 = vpop.f32.mrb[0].mxu0
        %v508 = vadd.f32 0.0, %v507
        %v509 = vpop.f32.mrb[0].mxu0
        %510 = vdwg.mxu0
        %v511 = vadd.f32 %v428, %v508
        %512 = vst.msk [vmem:[#allocation2] sm:$0xff] %vm272, %v511
        // Predicated region
        $region41: #{tpu_custom_call.1} parent=35 // pred_check
          %p513 = pneg %p261
        $region42: #{tpu_custom_call.1} parent=35 // pred_check_branch
          %515 = sbr.rel (%p513) target = $region44
        $region43: #{tpu_custom_call.1} parent=35 // pred_region
          %v516 = vld [vmem:[#allocation2] sm:$0xff]
          %517 = vst.msk [vmem:[%s242] sm:$0xff] %vm272, %v516
        $region44: #{tpu_custom_call.1} parent=35 // pred_fallthru
          _
        %s518 = sand.u32 %s142, 1
        %s519 = scalar_lea.sflag [#allocation4], %s518
        %s520 = sand.u32 %s142, 1
        %s521 = smul.addr %s520, 8
        %s522 = scalar_lea.vmem [#allocation3], %s521
        // Predicated region
        $region45: #{tpu_custom_call.1} parent=35 // pred_check
          %p523 = pneg %p152
        $region46: #{tpu_custom_call.1} parent=35 // pred_check_branch
          %525 = sbr.rel (%p523) target = $region48
        $region47: #{tpu_custom_call.1} parent=35 // pred_region
          %s527 = ssub.s32 128, 128
          %528 = vsyncadd %s519, %s527
          %s529 = smul.addr %s22, 128
          %s530 = scalar_lea.hbm %s4, %s529
          %s532 = sshll.u32 %s522, 4
          %s533 = int_to_ptr.vmem [resolvable:$true] %s532
          %535 = dma.vmem_to_hbm [thread:$0]  %s533, 128, %s530, %s519
        $region48: #{tpu_custom_call.1} parent=35 // pred_fallthru
          _
      $region36: #{tpu_custom_call.1} parent=5 // pred_fallthru
        _
      %p536 = scmp.le.s32.totalorder 2, %s13
      // Predicated region
      $region49: #{tpu_custom_call.1} parent=5 // pred_check
        %p537 = pneg %p536
      $region50: #{tpu_custom_call.1} parent=5 // pred_check_branch
        %539 = sbr.rel (%p537) target = $region52
      $region51: #{tpu_custom_call.1} parent=5 // pred_region
        %s540 = ssub.s32 %s13, 2
        // Predicated region
        $region53: #{tpu_custom_call.1} parent=51 // pred_check
          %p541 = pneg %p158
        $region54: #{tpu_custom_call.1} parent=51 // pred_check_branch
          %543 = sbr.rel (%p541) target = $region56
        $region55: #{tpu_custom_call.1} parent=51 // pred_region
          %s544 = sand.u32 %s143, 1
          %s545 = scalar_lea.sflag [#allocation4], %s544
          %s546 = sand.u32 %s143, 1
          %s547 = smul.addr %s546, 8
          %s548 = scalar_lea.vmem [#allocation3], %s547
          %549 = dma.done %s545, 128
        $region56: #{tpu_custom_call.1} parent=51 // pred_fallthru
          _
      $region52: #{tpu_custom_call.1} parent=5 // pred_fallthru
        _
    $region6: #{tpu_custom_call.1} parent=1 // loop_footer
      %s17 = sadd.s32 1, %s13
    $region7: #{tpu_custom_call.1} parent=1 // loop_footer_branch
      %12 = sbr.rel target = $region3
    $region8: #{tpu_custom_call.1} parent=1 // loop_exit
      _
    %550 = vsyncpa [#allocation4], 1
    %s551 = scalar_lea.sflag [#allocation4], 1
    %552 = vsyncpa %s551, 1

</llo_original>
